<compile_context>
chip_gen: v7x
topology: tpu7x:2x2x1
jax: 0.10.0
libtpu: 0.0.40
codegen_flags: <defaults>
</compile_context>

<pallas_src>
import functools

import jax
import jax.numpy as jnp
from jax.experimental import pallas as pl
from jax.experimental.pallas import tpu as pltpu


def _rope_kernel(x_ref, cos_ref, sin_ref, o_ref):
    # x_ref / o_ref: (TBH, S*D) tile.  cos_ref / sin_ref: (1, S*D) tables.
    x = x_ref[...].astype(jnp.float32)
    n = x.shape[-1]
    # swap_pairs: y[2k] = x[2k+1], y[2k+1] = x[2k]   (pairs never straddle a row
    # because D is even, so the wrap-around lanes of each roll are never selected)
    x_next = pltpu.roll(x, shift=n - 1, axis=1)   # y[i] = x[i + 1]
    x_prev = pltpu.roll(x, shift=1, axis=1)       # y[i] = x[i - 1]
    lane = jax.lax.broadcasted_iota(jnp.int32, x.shape, dimension=1)
    x_swap = jnp.where((lane & 1) == 0, x_next, x_prev)
    out = x * cos_ref[...] + x_swap * sin_ref[...]
    o_ref[...] = out.astype(o_ref.dtype)


def _choose_block_rows(n_rows, row_bytes, target_bytes=2 << 20):
    """Pick rows-per-grid-step: a divisor of n_rows that is a multiple of 8
    (sublane-aligned) whose tile fits the byte target; fall back to the full dim."""
    cands = [d for d in range(8, n_rows + 1, 8) if n_rows % d == 0]
    fitting = [d for d in cands if d * row_bytes <= target_bytes]
    if fitting:
        return max(fitting)
    if cands:
        return min(cands)
    return n_rows  # no 8-aligned divisor: use the full dim (always a legal block)


@functools.partial(jax.jit, static_argnames=("seq_len", "base"))
def rotary_positional_embedding(x, seq_len, base=10000):
    """Interleaved RoPE on x of shape (B, H, S, D); matches the PyTorch module."""
    B, H, S, D = x.shape
    assert S == seq_len, "seq_len must match x's sequence axis"
    assert D % 2 == 0, "head dim must be even"
    BH = B * H
    N = S * D

    # Frequency tables (module __init__ + _get_freqs), expanded so the kernel can
    # rotate without de-interleaving:
    #   cos_full[s, d]   =  cos(freqs[s, d // 2])
    #   sin_signed[s, d] = -sin(freqs[s, d//2]) if d is even else +sin(freqs[s, d//2])
    inv_freq = 1.0 / (base ** (jnp.arange(0, D, 2, dtype=jnp.float32) / D))
    t = jnp.arange(S, dtype=jnp.float32)
    freqs = t[:, None] * inv_freq[None, :]                      # (S, D/2)
    cos_full = jnp.repeat(jnp.cos(freqs), 2, axis=-1)           # (S, D)
    sign = jnp.where(jnp.arange(D) % 2 == 0, -1.0, 1.0).astype(jnp.float32)
    sin_signed = jnp.repeat(jnp.sin(freqs), 2, axis=-1) * sign[None, :]

    # Layout glue only: contiguous reshapes (no strided slicing, no extra HBM pass).
    x2d = x.reshape(BH, N)
    cos2d = cos_full.reshape(1, N)
    sin2d = sin_signed.reshape(1, N)

    itemsize = x.dtype.itemsize
    tbh = _choose_block_rows(BH, N * itemsize)
    tile_bytes = tbh * N * itemsize
    tbl_bytes = 2 * N * 4
    # 2x double-buffered input tile + 2x output tile + tables + headroom,
    # clamped to [32 MiB, 64 MiB] so it is valid on v5e/v6e/v7x alike.
    vmem_limit = int(min(64 << 20, max(32 << 20, 4 * tile_bytes + 2 * tbl_bytes + (4 << 20))))

    x_spec = pl.BlockSpec((tbh, N), lambda i: (i, 0))
    tbl_spec = pl.BlockSpec((1, N), lambda i: (0, 0))   # constant index: stays resident

    out2d = pl.pallas_call(
        _rope_kernel,
        out_shape=jax.ShapeDtypeStruct((BH, N), x.dtype),
        grid_spec=pltpu.PrefetchScalarGridSpec(
            num_scalar_prefetch=0,
            grid=(BH // tbh,),
            in_specs=[x_spec, tbl_spec, tbl_spec],
            out_specs=x_spec,
        ),
        compiler_params=pltpu.CompilerParams(
            dimension_semantics=("parallel",),
            vmem_limit_bytes=vmem_limit,
        ),
        # If the caller can donate x, pass input_output_aliases={0: 0} here to
        # write the result in place and skip the output HBM allocation.
    )(x2d, cos2d, sin2d)

    return out2d.reshape(B, H, S, D)


def _rope_reference(x, seq_len, base=10000):
    """Pure-JAX reference reproducing the PyTorch forward exactly."""
    B, H, S, D = x.shape
    inv_freq = 1.0 / (base ** (jnp.arange(0, D, 2, dtype=jnp.float32) / D))
    t = jnp.arange(seq_len, dtype=jnp.float32)
    freqs = t[:, None] * inv_freq[None, :]
    cosf = jnp.cos(freqs)[None, None, :, :]
    sinf = jnp.sin(freqs)[None, None, :, :]
    x1, x2 = x[..., 0::2], x[..., 1::2]
    out_even = x1 * cosf - x2 * sinf
    out_odd = x1 * sinf + x2 * cosf
    return jnp.stack([out_even, out_odd], axis=-1).reshape(B, H, S, D)


if __name__ == "__main__":
    # Small shapes consistent with the module's RoPE usage: (batch, heads, seq, head_dim)
    B, H, S, D = 2, 4, 8, 32
    key = jax.random.PRNGKey(0)
    x = jax.random.normal(key, (B, H, S, D), dtype=jnp.float32)

    out = rotary_positional_embedding(x, seq_len=S)
    out = jax.block_until_ready(out)

    ref = _rope_reference(x, seq_len=S)
    assert out.shape == x.shape and out.dtype == x.dtype
    assert jnp.allclose(out, ref, atol=1e-5, rtol=1e-5), "mismatch vs reference"

    print("KERNEL_OK")
</pallas_src>

<mosaic_0001>
module attributes {stable_mosaic.version = 11 : i64} {
  func.func @_rope_kernel(%arg0: i32, %arg1: memref<8x256xf32, #tpu.memory_space<vmem>>, %arg2: memref<1x256xf32, #tpu.memory_space<vmem>>, %arg3: memref<1x256xf32, #tpu.memory_space<vmem>>, %arg4: memref<8x256xf32, #tpu.memory_space<vmem>>) attributes {dimension_semantics = [#tpu.dimension_semantics<parallel>], iteration_bounds = array<i64: 1>, scalar_prefetch = 0 : i64, scratch_operands = 0 : i64, tpu.core_type = #tpu.core_type<tc>, window_params = [{transform_indices = @transform_0, window_bounds = array<i64: 8, 256>}, {pipeline_mode = #tpu.pipeline_mode<synchronous>, transform_indices = @transform_1, window_bounds = array<i64: 1, 256>}, {pipeline_mode = #tpu.pipeline_mode<synchronous>, transform_indices = @transform_2, window_bounds = array<i64: 1, 256>}, {transform_indices = @transform_3, window_bounds = array<i64: 8, 256>}]} {
    %c0 = arith.constant 0 : index
    %c0_0 = arith.constant 0 : index
    %0 = vector.load %arg1[%c0, %c0_0] : memref<8x256xf32, #tpu.memory_space<vmem>>, vector<8x256xf32>
    %c255_i32 = arith.constant 255 : i32
    %1 = tpu.dynamic_rotate %0 by %c255_i32 dim 1 : vector<8x256xf32>, i32 -> vector<8x256xf32>
    %c1_i32 = arith.constant 1 : i32
    %2 = tpu.dynamic_rotate %0 by %c1_i32 dim 1 : vector<8x256xf32>, i32 -> vector<8x256xf32>
    %3 = tpu.iota {dimensions = array<i32: 1>} : vector<8x256xi32>
    %c1_i32_1 = arith.constant 1 : i32
    %4 = vector.broadcast %c1_i32_1 : i32 to vector<8x256xi32>
    %5 = arith.andi %3, %4 : vector<8x256xi32>
    %c0_i32 = arith.constant 0 : i32
    %6 = vector.broadcast %c0_i32 : i32 to vector<8x256xi32>
    %7 = arith.cmpi eq, %5, %6 : vector<8x256xi32>
    %8 = arith.select %7, %1, %2 : vector<8x256xi1>, vector<8x256xf32>
    %c0_2 = arith.constant 0 : index
    %c0_3 = arith.constant 0 : index
    %9 = vector.load %arg2[%c0_2, %c0_3] : memref<1x256xf32, #tpu.memory_space<vmem>>, vector<1x256xf32>
    %10 = vector.broadcast %9 : vector<1x256xf32> to vector<8x256xf32>
    %11 = arith.mulf %0, %10 : vector<8x256xf32>
    %c0_4 = arith.constant 0 : index
    %c0_5 = arith.constant 0 : index
    %12 = vector.load %arg3[%c0_4, %c0_5] : memref<1x256xf32, #tpu.memory_space<vmem>>, vector<1x256xf32>
    %13 = vector.broadcast %12 : vector<1x256xf32> to vector<8x256xf32>
    %14 = arith.mulf %8, %13 : vector<8x256xf32>
    %15 = arith.addf %11, %14 : vector<8x256xf32>
    %c0_6 = arith.constant 0 : index
    %c0_7 = arith.constant 0 : index
    %16 = vector.load %arg4[%c0_6, %c0_7] : memref<8x256xf32, #tpu.memory_space<vmem>>, vector<8x256xf32>
    tpu.vector_store %arg4[%c0_6, %c0_7], %15 {strides = array<i32>} : memref<8x256xf32, #tpu.memory_space<vmem>>, vector<8x256xf32>,
    return
  }
  func.func @transform_0(%arg0: i32) -> (i32, i32) {
    %c0_i32 = arith.constant 0 : i32
    %c0_i32_0 = arith.constant 0 : i32
    return %arg0, %c0_i32 : i32, i32
  }
  func.func @transform_1(%arg0: i32) -> (i32, i32) {
    %c0_i32 = arith.constant 0 : i32
    %c0_i32_0 = arith.constant 0 : i32
    %c0_i32_1 = arith.constant 0 : i32
    return %c0_i32, %c0_i32_0 : i32, i32
  }
  func.func @transform_2(%arg0: i32) -> (i32, i32) {
    %c0_i32 = arith.constant 0 : i32
    %c0_i32_0 = arith.constant 0 : i32
    %c0_i32_1 = arith.constant 0 : i32
    return %c0_i32, %c0_i32_0 : i32, i32
  }
  func.func @transform_3(%arg0: i32) -> (i32, i32) {
    %c0_i32 = arith.constant 0 : i32
    %c0_i32_0 = arith.constant 0 : i32
    return %arg0, %c0_i32 : i32, i32
  }
}

</mosaic_0001>

<llo_original>
// kernel: mul.7
$region0: #{mul.7}
  #allocation0 [shape = 's32[1]{0}', space=sflag, size = 0x4, scoped, tag = 'scoped memory for mul.7']
  %s0 = inlined_call_operand.vmem [shape: f32[1,256], index: 0, kind: input, shape index: {}]
  %s1 = inlined_call_operand.vmem [shape: f32[1,256], index: 1, kind: input, shape index: {}]
  %s2 = inlined_call_operand.vmem [shape: f32[1,256], index: 2, kind: output, shape index: {}]
  %v3 = vld [vmem:[%s0] sm:$0x1]
  %v4 = vld [vmem:[%s1] sm:$0x1]
  %5 = xla_tuple %v3, %v4
  %6 = xla_tuple %5
  %v7 = vmul.f32 %v3, %v4
  %8 = xla_tuple %v7
  %9 = vst [vmem:[%s2] sm:$0x1] %v7
  %s10 = scalar_lea.vmem %s0, 1
  %v11 = vld [vmem:[%s10] sm:$0x1]
  %s12 = scalar_lea.vmem %s1, 1
  %v13 = vld [vmem:[%s12] sm:$0x1]
  %14 = xla_tuple %v11, %v13
  %15 = xla_tuple %14
  %v16 = vmul.f32 %v11, %v13
  %17 = xla_tuple %v16
  %s18 = scalar_lea.vmem %s2, 1
  %19 = vst [vmem:[%s18] sm:$0x1] %v16

// kernel: rotary_positional_embedding.1
$region0: #{rotary_positional_embedding.1}
  #allocation0 [shape = 'u32[]', space=smem, size = 0x4, offset = 0x4, fixed_abs, tag = 'smem constant byte address 0x4 - core index']
  #allocation1 [shape = 'u32[144,128]{1,0:T(1,128)}', space=vmem, size = 0x12000, scoped, tag = 'internal scratch']
  %s0 = inlined_call_operand.vmem [shape: f32[8,256], index: 0, kind: input, shape index: {}]
  %s1 = inlined_call_operand.vmem [shape: f32[1,256], index: 1, kind: input, shape index: {}]
  %s2 = inlined_call_operand.vmem [shape: f32[1,256], index: 2, kind: input, shape index: {}]
  %s3 = inlined_call_operand.vmem [shape: f32[8,256], index: 3, kind: output, shape index: {}]
  %s4 = sld [smem:[#allocation0]]
  $region22: #{rotary_positional_embedding.1} parent=0
    _
  %s6 = ssub.s32 1, %s4
  %s7 = scalar_select 0, %s6, %s4
  // Predicated region
  $region2: #{rotary_positional_embedding.1} parent=0 // pred_check
    _
  $region3: #{rotary_positional_embedding.1} parent=0 // pred_check_branch
    %9 = sbr.rel (0) target = $region5
  $region4: #{rotary_positional_embedding.1} parent=0 // pred_region
    _
  $region5: #{rotary_positional_embedding.1} parent=0 // pred_fallthru
    _
  // Predicated region
  $region6: #{rotary_positional_embedding.1} parent=0 // pred_check
    _
  $region7: #{rotary_positional_embedding.1} parent=0 // pred_check_branch
    %11 = sbr.rel (0) target = $region9
  $region8: #{rotary_positional_embedding.1} parent=0 // pred_region
    _
  $region9: #{rotary_positional_embedding.1} parent=0 // pred_fallthru
    _
  // Predicated region
  $region10: #{rotary_positional_embedding.1} parent=0 // pred_check
    _
  $region11: #{rotary_positional_embedding.1} parent=0 // pred_check_branch
    %13 = sbr.rel (0) target = $region13
  $region12: #{rotary_positional_embedding.1} parent=0 // pred_region
    _
  $region13: #{rotary_positional_embedding.1} parent=0 // pred_fallthru
    _
  %v14 = vld [vmem:[%s0] sm:$0xff]
  %v15 = vld [vmem:[%s0 + $0x8] sm:$0xff]
  %16 = vrot.lane.b32.xlu0 %v14, 127
  %v17 = vpop.permute.xlu0 %16
  %18 = vrot.lane.b32.xlu0 %v15, 127
  %v19 = vpop.permute.xlu0 %18
  %v20 = vlaneseq
  %v21 = vand.u32 %v20, 127
  %vm22 = vcmp.lt.s32.totalorder %v21, 127
  %v23 = vsel %vm22, %v17, %v19
  %v24 = vsel %vm22, %v19, %v17
  %25 = vrot.lane.b32.xlu0 %v14, 1
  %v26 = vpop.permute.xlu0 %25
  %27 = vrot.lane.b32.xlu0 %v15, 1
  %v28 = vpop.permute.xlu0 %27
  %vm29 = vcmp.lt.s32.totalorder %v21, 1
  %v30 = vsel %vm29, %v26, %v28
  %v31 = vsel %vm29, %v28, %v26
  %v32 = vadd.s32 %v21, 128
  %v33 = vand.u32 %v21, 1
  %v34 = vand.u32 %v32, 1
  %vm35 = vcmp.eq.s32.totalorder %v33, 0
  %vm36 = vcmp.eq.s32.totalorder %v34, 0
  %v37 = vsel %vm35, %v23, %v31
  %v38 = vsel %vm36, %v24, %v30
  %v39 = vld [vmem:[%s1] sm:$0x3]
  %v41 = vlaneseq
  %v42 = vshrl.u32 %v41, 7
  %v43 = vsub.s32 0, %v42
  %v44 = vrot.slane %v39, %v43
  %v45 = vlaneseq
  %v46 = vshrl.u32 %v45, 7
  %v47 = vsub.s32 1, %v46
  %v48 = vrot.slane %v39, %v47
  %v51 = vmul.f32 %v14, %v44
  %v52 = vmul.f32 %v15, %v48
  %v53 = vld [vmem:[%s2] sm:$0x3]
  %v55 = vlaneseq
  %v56 = vshrl.u32 %v55, 7
  %v57 = vsub.s32 0, %v56
  %v58 = vrot.slane %v53, %v57
  %v59 = vlaneseq
  %v60 = vshrl.u32 %v59, 7
  %v61 = vsub.s32 1, %v60
  %v62 = vrot.slane %v53, %v61
  %v65 = vmul.f32 %v37, %v58
  %v66 = vmul.f32 %v38, %v62
  %v67 = vadd.f32 %v51, %v65
  %v68 = vadd.f32 %v52, %v66
  %69 = vst [vmem:[%s3] sm:$0xff] %v67
  %70 = vst [vmem:[%s3 + $0x8] sm:$0xff] %v68
  // Predicated region
  $region14: #{rotary_positional_embedding.1} parent=0 // pred_check
    _
  $region15: #{rotary_positional_embedding.1} parent=0 // pred_check_branch
    %72 = sbr.rel (0) target = $region17
  $region16: #{rotary_positional_embedding.1} parent=0 // pred_region
    _
  $region17: #{rotary_positional_embedding.1} parent=0 // pred_fallthru
    _
  // Predicated region
  $region18: #{rotary_positional_embedding.1} parent=0 // pred_check
    _
  $region19: #{rotary_positional_embedding.1} parent=0 // pred_check_branch
    %74 = sbr.rel (0) target = $region21
  $region20: #{rotary_positional_embedding.1} parent=0 // pred_region
    _
  $region21: #{rotary_positional_embedding.1} parent=0 // pred_fallthru
    _

</llo_original>
